<compile_context>
chip_gen: v6e
topology: v6e:2x2x1
jax: 0.10.0
libtpu: 0.0.40
codegen_flags: <defaults>
</compile_context>

<pallas_src>
import functools
import numpy as np
import jax
import jax.numpy as jnp
from jax.experimental import pallas as pl
from jax.experimental.pallas import tpu as pltpu


# ------------------------------------------------------------------ tiling helpers

def _round_up(v, m):
    return ((v + m - 1) // m) * m


def _choose_token_tile(T, K, E, pref=512, budget_bytes=12 << 20):
    """Largest token tile (multiple of 8 sublanes) whose double-buffered working
    set stays comfortably inside the default scoped-VMEM limit on all TPU gens."""
    tm = min(pref, max(8, _round_up(T, 8)))
    tm = _round_up(tm, 8)

    def footprint(t):
        # double-buffered x tile + out tile, plus resident weight/bias/LN params
        return 4 * (2 * t * (K + E) + 2 * (K * E + 3 * E))

    while tm > 8 and footprint(tm) > budget_bytes:
        tm //= 2
    return max(8, tm)


# ------------------------------------------------------------------ Pallas kernel

def _patch_embed_kernel(x_ref, w_ref, b_ref, g_ref, bb_ref, o_ref, *,
                        eps, use_norm, compute_dtype):
    x = x_ref[...].astype(compute_dtype)                        # (tm, K)
    w = w_ref[...].astype(compute_dtype)                        # (K, E) resident
    y = jnp.dot(x, w, preferred_element_type=jnp.float32)       # MXU, f32 accumulate
    y = y + b_ref[...].astype(jnp.float32)                      # (1, E) conv bias
    if use_norm:                                                # fused LayerNorm epilogue
        mu = jnp.mean(y, axis=-1, keepdims=True)
        var = jnp.mean((y - mu) ** 2, axis=-1, keepdims=True)
        y = (y - mu) * jax.lax.rsqrt(var + eps)
        y = y * g_ref[...].astype(jnp.float32) + bb_ref[...].astype(jnp.float32)
    o_ref[...] = y.astype(o_ref.dtype)


def _fused_proj_norm(xt, w_t, bias, gamma, beta, *, use_norm,
                     eps=1e-5, compute_dtype=jnp.float32):
    T, K = xt.shape
    E = w_t.shape[1]
    tm = _choose_token_tile(T, K, E)
    Tp = _round_up(T, tm)
    if Tp != T:
        xt = jnp.pad(xt, ((0, Tp - T), (0, 0)))

    out = pl.pallas_call(
        functools.partial(_patch_embed_kernel, eps=eps, use_norm=use_norm,
                          compute_dtype=compute_dtype),
        out_shape=jax.ShapeDtypeStruct((Tp, E), xt.dtype),
        grid=(Tp // tm,),
        in_specs=[
            pl.BlockSpec((tm, K), lambda i: (i, 0)),     # streamed token tile
            pl.BlockSpec((K, E), lambda i: (0, 0)),      # resident projection weight
            pl.BlockSpec((1, E), lambda i: (0, 0)),      # conv bias
            pl.BlockSpec((1, E), lambda i: (0, 0)),      # LN gamma
            pl.BlockSpec((1, E), lambda i: (0, 0)),      # LN beta
        ],
        out_specs=pl.BlockSpec((tm, E), lambda i: (i, 0)),
        compiler_params=pltpu.CompilerParams(
            dimension_semantics=("parallel",),           # shard tiles over v7x's 2 TCs
        ),
    )(xt, w_t, bias.reshape(1, E), gamma.reshape(1, E), beta.reshape(1, E))
    return out[:T]


# ------------------------------------------------------------------ module forward

def patch_embed3d_forward(x, params, patch_size, *, use_norm=True,
                          compute_dtype=jnp.float32):
    """x: (B, Cin, D, H, W) -> (B, E, ceil(D/ps), ceil(H/ps), ceil(W/ps))."""
    ps = int(patch_size)
    B, Cin, D, H, W = x.shape
    pad = ((0, 0), (0, 0),
           (0, (ps - D % ps) % ps),
           (0, (ps - H % ps) % ps),
           (0, (ps - W % ps) % ps))
    x = jnp.pad(x, pad)
    _, _, Dp, Hp, Wp = x.shape
    Do, Ho, Wo = Dp // ps, Hp // ps, Wp // ps

    # Patch extraction: (B, Cin, Dp, Hp, Wp) -> (T, K) with K = Cin*ps^3; token
    # order (b, d, h, w) and patch-vector order (c, kd, kh, kw) match Conv3d's
    # flattened weight layout.  (Layout plumbing kept in XLA glue.)
    xt = x.reshape(B, Cin, Do, ps, Ho, ps, Wo, ps)
    xt = jnp.transpose(xt, (0, 2, 4, 6, 1, 3, 5, 7))
    xt = xt.reshape(B * Do * Ho * Wo, Cin * ps ** 3)

    E = params["proj_w"].shape[0]
    w_t = params["proj_w"].reshape(E, -1).T                     # (K, E), pre-transposed

    y = _fused_proj_norm(xt, w_t, params["proj_b"],
                         params["norm_g"], params["norm_b"],
                         use_norm=use_norm, compute_dtype=compute_dtype)

    y = y.reshape(B, Do, Ho, Wo, E)
    return jnp.transpose(y, (0, 4, 1, 2, 3))                    # (B, E, Do, Ho, Wo)


# ------------------------------------------------------------------ params

def init_params(key, in_channels, embed_dim, patch_size):
    k1, k2 = jax.random.split(key)
    fan_in = in_channels * patch_size ** 3
    w = jax.random.normal(
        k1, (embed_dim, in_channels, patch_size, patch_size, patch_size),
        jnp.float32) * (1.0 / np.sqrt(fan_in))
    b = 0.02 * jax.random.normal(k2, (embed_dim,), jnp.float32)
    return dict(
        proj_w=w,                                    # Conv3d weight (E, Cin, ps, ps, ps)
        proj_b=b,                                    # Conv3d bias   (E,)
        norm_g=jnp.ones((embed_dim,), jnp.float32),  # LayerNorm weight
        norm_b=jnp.zeros((embed_dim,), jnp.float32), # LayerNorm bias
    )


# ------------------------------------------------------------------ pure-JAX reference

def reference_forward(x, params, patch_size, use_norm, eps=1e-5):
    ps = int(patch_size)
    B, Cin, D, H, W = x.shape
    pad = ((0, 0), (0, 0),
           (0, (ps - D % ps) % ps),
           (0, (ps - H % ps) % ps),
           (0, (ps - W % ps) % ps))
    xp = jnp.pad(x, pad)
    _, _, Dp, Hp, Wp = xp.shape
    Do, Ho, Wo = Dp // ps, Hp // ps, Wp // ps
    xr = xp.reshape(B, Cin, Do, ps, Ho, ps, Wo, ps)
    y = jnp.einsum("bcxiyjzk,ecijk->bexyz", xr, params["proj_w"],
                   precision=jax.lax.Precision.HIGHEST)
    y = y + params["proj_b"][None, :, None, None, None]
    if use_norm:
        E = y.shape[1]
        t = y.reshape(B, E, -1).transpose(0, 2, 1)
        mu = t.mean(-1, keepdims=True)
        var = ((t - mu) ** 2).mean(-1, keepdims=True)
        t = (t - mu) / jnp.sqrt(var + eps) * params["norm_g"] + params["norm_b"]
        y = t.transpose(0, 2, 1).reshape(B, E, Do, Ho, Wo)
    return y


# ------------------------------------------------------------------ main

if __name__ == "__main__":
    B, Cin, D, H, W = 2, 3, 9, 18, 18          # non-divisible dims exercise the pad path
    patch_size, embed_dim = 4, 96

    key = jax.random.PRNGKey(0)
    kx, kp = jax.random.split(key)
    x = jax.random.normal(kx, (B, Cin, D, H, W), jnp.float32)
    params = init_params(kp, Cin, embed_dim, patch_size)

    Do, Ho, Wo = -(-D // patch_size), -(-H // patch_size), -(-W // patch_size)

    for use_norm in (True, False):             # both norm_layer=LayerNorm and norm_layer=None
        y = patch_embed3d_forward(x, params, patch_size, use_norm=use_norm)
        y = jax.block_until_ready(y)
        assert y.shape == (B, embed_dim, Do, Ho, Wo), y.shape
        assert bool(jnp.all(jnp.isfinite(y)))
        y_ref = reference_forward(x, params, patch_size, use_norm)
        err = float(jnp.max(jnp.abs(y - y_ref)))
        assert err < 5e-2, f"max abs error {err} (use_norm={use_norm})"

    print("KERNEL_OK")
</pallas_src>

<mosaic_0001>
module attributes {stable_mosaic.version = 11 : i64} {
  func.func @_patch_embed_kernel(%arg0: i32, %arg1: memref<152x192xf32, #tpu.memory_space<vmem>>, %arg2: memref<192x96xf32, #tpu.memory_space<vmem>>, %arg3: memref<1x96xf32, #tpu.memory_space<vmem>>, %arg4: memref<1x96xf32, #tpu.memory_space<vmem>>, %arg5: memref<1x96xf32, #tpu.memory_space<vmem>>, %arg6: memref<152x96xf32, #tpu.memory_space<vmem>>) attributes {dimension_semantics = [#tpu.dimension_semantics<parallel>], iteration_bounds = array<i64: 1>, scalar_prefetch = 0 : i64, scratch_operands = 0 : i64, tpu.core_type = #tpu.core_type<tc>, window_params = [{transform_indices = @transform_0, window_bounds = array<i64: 152, 192>}, {pipeline_mode = #tpu.pipeline_mode<synchronous>, transform_indices = @transform_1, window_bounds = array<i64: 192, 96>}, {pipeline_mode = #tpu.pipeline_mode<synchronous>, transform_indices = @transform_2, window_bounds = array<i64: 1, 96>}, {pipeline_mode = #tpu.pipeline_mode<synchronous>, transform_indices = @transform_3, window_bounds = array<i64: 1, 96>}, {pipeline_mode = #tpu.pipeline_mode<synchronous>, transform_indices = @transform_4, window_bounds = array<i64: 1, 96>}, {transform_indices = @transform_5, window_bounds = array<i64: 152, 96>}]} {
    %c0 = arith.constant 0 : index
    %c0_0 = arith.constant 0 : index
    %0 = vector.load %arg1[%c0, %c0_0] : memref<152x192xf32, #tpu.memory_space<vmem>>, vector<152x192xf32>
    %c0_1 = arith.constant 0 : index
    %c0_2 = arith.constant 0 : index
    %1 = vector.load %arg2[%c0_1, %c0_2] : memref<192x96xf32, #tpu.memory_space<vmem>>, vector<192x96xf32>
    %cst = arith.constant dense<0.000000e+00> : vector<152x96xf32>
    %2 = tpu.matmul %0, %1, %cst {dimension_numbers = #tpu.dot_dimension_numbers<[1], [0], [0], [1], [0, 0, 1, 1], [], []>} : vector<152x192xf32>, vector<192x96xf32>, vector<152x96xf32> -> vector<152x96xf32>
    %c0_3 = arith.constant 0 : index
    %c0_4 = arith.constant 0 : index
    %3 = vector.load %arg3[%c0_3, %c0_4] : memref<1x96xf32, #tpu.memory_space<vmem>>, vector<1x96xf32>
    %4 = vector.broadcast %3 : vector<1x96xf32> to vector<152x96xf32>
    %5 = arith.addf %2, %4 : vector<152x96xf32>
    %cst_5 = arith.constant dense<0.000000e+00> : vector<152xf32>
    %6 = vector.multi_reduction <add>, %5, %cst_5 [1] : vector<152x96xf32> to vector<152xf32>
    %7 = vector.shape_cast %6 : vector<152xf32> to vector<152x1xf32>
    %cst_6 = arith.constant 9.600000e+01 : f32
    %8 = vector.broadcast %cst_6 : f32 to vector<152x1xf32>
    %9 = arith.divf %7, %8 : vector<152x1xf32>
    %10 = vector.broadcast %9 : vector<152x1xf32> to vector<152x96xf32>
    %11 = arith.subf %5, %10 : vector<152x96xf32>
    %12 = arith.mulf %11, %11 : vector<152x96xf32>
    %cst_7 = arith.constant dense<0.000000e+00> : vector<152xf32>
    %13 = vector.multi_reduction <add>, %12, %cst_7 [1] : vector<152x96xf32> to vector<152xf32>
    %14 = vector.shape_cast %13 : vector<152xf32> to vector<152x1xf32>
    %cst_8 = arith.constant 9.600000e+01 : f32
    %15 = vector.broadcast %cst_8 : f32 to vector<152x1xf32>
    %16 = arith.divf %14, %15 : vector<152x1xf32>
    %17 = vector.broadcast %9 : vector<152x1xf32> to vector<152x96xf32>
    %18 = arith.subf %5, %17 : vector<152x96xf32>
    %cst_9 = arith.constant 9.99999974E-6 : f32
    %19 = vector.broadcast %cst_9 : f32 to vector<152x1xf32>
    %20 = arith.addf %16, %19 : vector<152x1xf32>
    %21 = math.rsqrt %20 : vector<152x1xf32>
    %22 = vector.broadcast %21 : vector<152x1xf32> to vector<152x96xf32>
    %23 = arith.mulf %18, %22 : vector<152x96xf32>
    %c0_10 = arith.constant 0 : index
    %c0_11 = arith.constant 0 : index
    %24 = vector.load %arg4[%c0_10, %c0_11] : memref<1x96xf32, #tpu.memory_space<vmem>>, vector<1x96xf32>
    %25 = vector.broadcast %24 : vector<1x96xf32> to vector<152x96xf32>
    %26 = arith.mulf %23, %25 : vector<152x96xf32>
    %c0_12 = arith.constant 0 : index
    %c0_13 = arith.constant 0 : index
    %27 = vector.load %arg5[%c0_12, %c0_13] : memref<1x96xf32, #tpu.memory_space<vmem>>, vector<1x96xf32>
    %28 = vector.broadcast %27 : vector<1x96xf32> to vector<152x96xf32>
    %29 = arith.addf %26, %28 : vector<152x96xf32>
    %c0_14 = arith.constant 0 : index
    %c0_15 = arith.constant 0 : index
    %30 = vector.load %arg6[%c0_14, %c0_15] : memref<152x96xf32, #tpu.memory_space<vmem>>, vector<152x96xf32>
    tpu.vector_store %arg6[%c0_14, %c0_15], %29 {strides = array<i32>} : memref<152x96xf32, #tpu.memory_space<vmem>>, vector<152x96xf32>,
    return
  }
  func.func @transform_0(%arg0: i32) -> (i32, i32) {
    %c0_i32 = arith.constant 0 : i32
    %c0_i32_0 = arith.constant 0 : i32
    return %arg0, %c0_i32 : i32, i32
  }
  func.func @transform_1(%arg0: i32) -> (i32, i32) {
    %c0_i32 = arith.constant 0 : i32
    %c0_i32_0 = arith.constant 0 : i32
    %c0_i32_1 = arith.constant 0 : i32
    return %c0_i32, %c0_i32_0 : i32, i32
  }
  func.func @transform_2(%arg0: i32) -> (i32, i32) {
    %c0_i32 = arith.constant 0 : i32
    %c0_i32_0 = arith.constant 0 : i32
    %c0_i32_1 = arith.constant 0 : i32
    return %c0_i32, %c0_i32_0 : i32, i32
  }
  func.func @transform_3(%arg0: i32) -> (i32, i32) {
    %c0_i32 = arith.constant 0 : i32
    %c0_i32_0 = arith.constant 0 : i32
    %c0_i32_1 = arith.constant 0 : i32
    return %c0_i32, %c0_i32_0 : i32, i32
  }
  func.func @transform_4(%arg0: i32) -> (i32, i32) {
    %c0_i32 = arith.constant 0 : i32
    %c0_i32_0 = arith.constant 0 : i32
    %c0_i32_1 = arith.constant 0 : i32
    return %c0_i32, %c0_i32_0 : i32, i32
  }
  func.func @transform_5(%arg0: i32) -> (i32, i32) {
    %c0_i32 = arith.constant 0 : i32
    %c0_i32_0 = arith.constant 0 : i32
    return %arg0, %c0_i32 : i32, i32
  }
}

</mosaic_0001>

<llo_original>
// kernel: tpu_custom_call.1
$region0: #{tpu_custom_call.1}
  #allocation0 [shape = 'u32[]', space=smem, size = 0x4, offset = 0x4, fixed_abs, tag = 'smem constant byte address 0x4 - core index']
  #allocation1 [shape = 'u32[144,128]{1,0:T(1,128)}', space=vmem, size = 0x12000, scoped, tag = 'internal scratch']
  %s0 = inlined_call_operand.hbm [shape: f32[152,192], index: 0, kind: input, shape index: {}]
  %s1 = inlined_call_operand.hbm [shape: f32[192,96], index: 1, kind: input, shape index: {}]
  %s2 = inlined_call_operand.vmem [shape: f32[1,96], index: 2, kind: input, shape index: {}]
  %s3 = inlined_call_operand.vmem [shape: f32[1,96], index: 3, kind: input, shape index: {}]
  %s4 = inlined_call_operand.vmem [shape: f32[1,96], index: 4, kind: input, shape index: {}]
  %s5 = inlined_call_operand.hbm [shape: f32[152,96], index: 5, kind: output, shape index: {}]
  %s6 = sld [smem:[#allocation0]]
  $region38: #{tpu_custom_call.1} parent=0
    _
  %s8 = ssub.s32 1, %s6
  %s9 = scalar_select 0, %s8, %s6
  $region1: #{tpu_custom_call.1} parent=0
    #allocation2 [shape = 'u8[155648]{0}', space=vmem, size = 0x26000, scoped, tag = 'input window, operand 0, single buffered']
    #allocation3 [shape = 's32[1]{0}', space=sflag, size = 0x4, scoped, tag = 'scoped memory for tpu_custom_call.1']
    #allocation4 [shape = 's32[1]{0}', space=sflag, size = 0x4, scoped, tag = 'scoped memory for tpu_custom_call.1']
    #allocation5 [shape = 'u8[98304]{0}', space=vmem, size = 0x18000, scoped, tag = 'input window, operand 1, single buffered']
    #allocation6 [shape = 's32[1]{0}', space=sflag, size = 0x4, scoped, tag = 'scoped memory for tpu_custom_call.1']
    #allocation7 [shape = 'u8[77824]{0}', space=vmem, size = 0x13000, scoped, tag = 'output window, operand 0, single buffered']
    %10 = vsyncpa [#allocation3], 0
    %11 = vsyncpa [#allocation6], 0
    %12 = vsyncpa [#allocation4], 0
    // Predicated region
    $region2: #{tpu_custom_call.1} parent=1 // pred_check
      _
    $region3: #{tpu_custom_call.1} parent=1 // pred_check_branch
      %14 = sbr.rel (0) target = $region5
    $region4: #{tpu_custom_call.1} parent=1 // pred_region
      %s16 = ssub.s32 4864, 4864
      %17 = vsyncadd [#allocation3], %s16
      %s18 = sshll.u32 [#allocation2], 4
      %s19 = int_to_ptr.vmem [resolvable:$true] %s18
      %24 = dma.hbm_to_vmem [thread:$0]  %s0, 4864, %s19, [#allocation3], 256, 256, 16
    $region5: #{tpu_custom_call.1} parent=1 // pred_fallthru
      _
    // Predicated region
    $region6: #{tpu_custom_call.1} parent=1 // pred_check
      _
    $region7: #{tpu_custom_call.1} parent=1 // pred_check_branch
      %26 = sbr.rel (0) target = $region9
    $region8: #{tpu_custom_call.1} parent=1 // pred_region
      %s28 = ssub.s32 3072, 3072
      %29 = vsyncadd [#allocation6], %s28
      %s30 = sshll.u32 [#allocation5], 4
      %s31 = int_to_ptr.vmem [resolvable:$true] %s30
      %36 = dma.hbm_to_vmem [thread:$0]  %s1, 3072, %s31, [#allocation6], 128, 128, 8
    $region9: #{tpu_custom_call.1} parent=1 // pred_fallthru
      _
    // Predicated region
    $region10: #{tpu_custom_call.1} parent=1 // pred_check
      _
    $region11: #{tpu_custom_call.1} parent=1 // pred_check_branch
      %38 = sbr.rel (0) target = $region13
    $region12: #{tpu_custom_call.1} parent=1 // pred_region
      _
    $region13: #{tpu_custom_call.1} parent=1 // pred_fallthru
      _
    // Predicated region
    $region14: #{tpu_custom_call.1} parent=1 // pred_check
      _
    $region15: #{tpu_custom_call.1} parent=1 // pred_check_branch
      %40 = sbr.rel (0) target = $region17
    $region16: #{tpu_custom_call.1} parent=1 // pred_region
      _
    $region17: #{tpu_custom_call.1} parent=1 // pred_fallthru
      _
    // Predicated region
    $region18: #{tpu_custom_call.1} parent=1 // pred_check
      _
    $region19: #{tpu_custom_call.1} parent=1 // pred_check_branch
      %42 = sbr.rel (0) target = $region21
    $region20: #{tpu_custom_call.1} parent=1 // pred_region
      _
    $region21: #{tpu_custom_call.1} parent=1 // pred_fallthru
      _
    // Predicated region
    $region22: #{tpu_custom_call.1} parent=1 // pred_check
      _
    $region23: #{tpu_custom_call.1} parent=1 // pred_check_branch
      %44 = sbr.rel (0) target = $region25
    $region24: #{tpu_custom_call.1} parent=1 // pred_region
      %45 = dma.done [#allocation3], 4864
    $region25: #{tpu_custom_call.1} parent=1 // pred_fallthru
      _
    // Predicated region
    $region26: #{tpu_custom_call.1} parent=1 // pred_check
      _
    $region27: #{tpu_custom_call.1} parent=1 // pred_check_branch
      %47 = sbr.rel (0) target = $region29
    $region28: #{tpu_custom_call.1} parent=1 // pred_region
      %48 = dma.done [#allocation6], 3072
    $region29: #{tpu_custom_call.1} parent=1 // pred_fallthru
      _
    %v49 = vld [vmem:[#allocation2] sm:$0xff]
    %v50 = vld [vmem:[#allocation2 + $0x8] sm:$0xff]
    %v51 = vld [vmem:[#allocation2 + $0x10] sm:$0xff]
    %v52 = vld [vmem:[#allocation2 + $0x18] sm:$0xff]
    %v53 = vld [vmem:[#allocation2 + $0x20] sm:$0xff]
    %v54 = vld [vmem:[#allocation2 + $0x28] sm:$0xff]
    %v55 = vld [vmem:[#allocation2 + $0x30] sm:$0xff]
    %v56 = vld [vmem:[#allocation2 + $0x38] sm:$0xff]
    %v57 = vld [vmem:[#allocation2 + $0x40] sm:$0xff]
    %v58 = vld [vmem:[#allocation2 + $0x48] sm:$0xff]
    %v59 = vld [vmem:[#allocation2 + $0x50] sm:$0xff]
    %v60 = vld [vmem:[#allocation2 + $0x58] sm:$0xff]
    %v61 = vld [vmem:[#allocation2 + $0x60] sm:$0xff]
    %v62 = vld [vmem:[#allocation2 + $0x68] sm:$0xff]
    %v63 = vld [vmem:[#allocation2 + $0x70] sm:$0xff]
    %v64 = vld [vmem:[#allocation2 + $0x78] sm:$0xff]
    %v65 = vld [vmem:[#allocation2 + $0x80] sm:$0xff]
    %v66 = vld [vmem:[#allocation2 + $0x88] sm:$0xff]
    %v67 = vld [vmem:[#allocation2 + $0x90] sm:$0xff]
    %v68 = vld [vmem:[#allocation2 + $0x98] sm:$0xff]
    %v69 = vld [vmem:[#allocation2 + $0xa0] sm:$0xff]
    %v70 = vld [vmem:[#allocation2 + $0xa8] sm:$0xff]
    %v71 = vld [vmem:[#allocation2 + $0xb0] sm:$0xff]
    %v72 = vld [vmem:[#allocation2 + $0xb8] sm:$0xff]
    %v73 = vld [vmem:[#allocation2 + $0xc0] sm:$0xff]
    %v74 = vld [vmem:[#allocation2 + $0xc8] sm:$0xff]
    %v75 = vld [vmem:[#allocation2 + $0xd0] sm:$0xff]
    %v76 = vld [vmem:[#allocation2 + $0xd8] sm:$0xff]
    %v77 = vld [vmem:[#allocation2 + $0xe0] sm:$0xff]
    %v78 = vld [vmem:[#allocation2 + $0xe8] sm:$0xff]
    %v79 = vld [vmem:[#allocation2 + $0xf0] sm:$0xff]
    %v80 = vld [vmem:[#allocation2 + $0xf8] sm:$0xff]
    %v81 = vld [vmem:[#allocation2 + $0x100] sm:$0xff]
    %v82 = vld [vmem:[#allocation2 + $0x108] sm:$0xff]
    %v83 = vld [vmem:[#allocation2 + $0x110] sm:$0xff]
    %v84 = vld [vmem:[#allocation2 + $0x118] sm:$0xff]
    %v85 = vld [vmem:[#allocation2 + $0x120] sm:$0xff]
    %v86 = vld [vmem:[#allocation2 + $0x128] sm:$0xff]
    %v87 = vld [vmem:[#allocation5] sm:$0xff]
    %v88 = vld [vmem:[#allocation5 + $0x8] sm:$0xff]
    %v89 = vld [vmem:[#allocation5 + $0x10] sm:$0xff]
    %v90 = vld [vmem:[#allocation5 + $0x18] sm:$0xff]
    %v91 = vld [vmem:[#allocation5 + $0x20] sm:$0xff]
    %v92 = vld [vmem:[#allocation5 + $0x28] sm:$0xff]
    %v93 = vld [vmem:[#allocation5 + $0x30] sm:$0xff]
    %v94 = vld [vmem:[#allocation5 + $0x38] sm:$0xff]
    %v95 = vld [vmem:[#allocation5 + $0x40] sm:$0xff]
    %v96 = vld [vmem:[#allocation5 + $0x48] sm:$0xff]
    %v97 = vld [vmem:[#allocation5 + $0x50] sm:$0xff]
    %v98 = vld [vmem:[#allocation5 + $0x58] sm:$0xff]
    %v99 = vld [vmem:[#allocation5 + $0x60] sm:$0xff]
    %v100 = vld [vmem:[#allocation5 + $0x68] sm:$0xff]
    %v101 = vld [vmem:[#allocation5 + $0x70] sm:$0xff]
    %v102 = vld [vmem:[#allocation5 + $0x78] sm:$0xff]
    %v103 = vld [vmem:[#allocation5 + $0x80] sm:$0xff]
    %v104 = vld [vmem:[#allocation5 + $0x88] sm:$0xff]
    %v105 = vld [vmem:[#allocation5 + $0x90] sm:$0xff]
    %v106 = vld [vmem:[#allocation5 + $0x98] sm:$0xff]
    %v107 = vld [vmem:[#allocation5 + $0xa0] sm:$0xff]
    %v108 = vld [vmem:[#allocation5 + $0xa8] sm:$0xff]
    %v109 = vld [vmem:[#allocation5 + $0xb0] sm:$0xff]
    %v110 = vld [vmem:[#allocation5 + $0xb8] sm:$0xff]
    %v111 = vld [vmem:[%s2] sm:$0x1]
    %v113 = vlaneseq
    %v114 = vshrl.u32 %v113, 7
    %v115 = vsub.s32 0, %v114
    %v116 = vrot.slane %v111, %v115
    %vm118 = vcmask 523264
    %v120 = vsel %vm118, %v50, 0
    %v123 = vsel %vm118, %v52, 0
    %v126 = vsel %vm118, %v54, 0
    %v129 = vsel %vm118, %v56, 0
    %v132 = vsel %vm118, %v58, 0
    %v135 = vsel %vm118, %v60, 0
    %v138 = vsel %vm118, %v62, 0
    %v141 = vsel %vm118, %v64, 0
    %v144 = vsel %vm118, %v66, 0
    %v147 = vsel %vm118, %v68, 0
    %v150 = vsel %vm118, %v70, 0
    %v153 = vsel %vm118, %v72, 0
    %v156 = vsel %vm118, %v74, 0
    %v159 = vsel %vm118, %v76, 0
    %v162 = vsel %vm118, %v78, 0
    %v165 = vsel %vm118, %v80, 0
    %v168 = vsel %vm118, %v82, 0
    %v171 = vsel %vm118, %v84, 0
    %v174 = vsel %vm118, %v86, 0
    %176 = vmatprep.subr.mxu0 0.0
    %177 = vmatpush1.msra.mxu0 %v102
    %178 = vmatprep.subr.mxu0 0.0
    %179 = vmatpush1.msra.mxu0 %v101
    %180 = vmatprep.subr.mxu0 0.0
    %181 = vmatpush1.msra.mxu0 %v100
    %182 = vmatprep.subr.mxu0 0.0
    %183 = vmatpush1.msra.mxu0 %v99
    %184 = vmatprep.subr.mxu0 0.0
    %185 = vmatpush1.msra.mxu0 %v98
    %186 = vmatprep.subr.mxu0 0.0
    %187 = vmatpush1.msra.mxu0 %v97
    %188 = vmatprep.subr.mxu0 0.0
    %189 = vmatpush1.msra.mxu0 %v96
    %190 = vmatprep.subr.mxu0 0.0
    %191 = vmatpush1.msra.mxu0 %v95
    %192 = vmatprep.subr.mxu0 0.0
    %193 = vmatpush1.msra.mxu0 %v94
    %194 = vmatprep.subr.mxu0 0.0
    %195 = vmatpush1.msra.mxu0 %v93
    %196 = vmatprep.subr.mxu0 0.0
    %197 = vmatpush1.msra.mxu0 %v92
    %198 = vmatprep.subr.mxu0 0.0
    %199 = vmatpush1.msra.mxu0 %v91
    %200 = vmatprep.subr.mxu0 0.0
    %201 = vmatpush1.msra.mxu0 %v90
    %202 = vmatprep.subr.mxu0 0.0
    %203 = vmatpush1.msra.mxu0 %v89
    %204 = vmatprep.subr.mxu0 0.0
    %205 = vmatpush1.msra.mxu0 %v88
    %206 = vmatprep.subr.mxu0 0.0
    %207 = vmatpush1.msra.mxu0 %v87
    %208 = vmatprep.subr.mxu0 0.0
    %209 = vmatpush2.msra.mxu0 0.0
    %210 = vmatprep.subr.mxu0 0.0
    %211 = vmatpush2.msra.mxu0 0.0
    %212 = vmatprep.subr.mxu0 0.0
    %213 = vmatpush2.msra.mxu0 0.0
    %214 = vmatprep.subr.mxu0 0.0
    %215 = vmatpush2.msra.mxu0 0.0
    %216 = vmatprep.subr.mxu0 0.0
    %217 = vmatpush2.msra.mxu0 0.0
    %218 = vmatprep.subr.mxu0 0.0
    %219 = vmatpush2.msra.mxu0 0.0
    %220 = vmatprep.subr.mxu0 0.0
    %221 = vmatpush2.msra.mxu0 0.0
    %222 = vmatprep.subr.mxu0 0.0
    %223 = vmatpush2.msra.mxu0 0.0
    %224 = vmatprep.subr.mxu0 0.0
    %225 = vmatpush2.msra.mxu0 %v110
    %226 = vmatprep.subr.mxu0 0.0
    %227 = vmatpush2.msra.mxu0 %v109
    %228 = vmatprep.subr.mxu0 0.0
    %229 = vmatpush2.msra.mxu0 %v108
    %230 = vmatprep.subr.mxu0 0.0
    %231 = vmatpush2.msra.mxu0 %v107
    %232 = vmatprep.subr.mxu0 0.0
    %233 = vmatpush2.msra.mxu0 %v106
    %234 = vmatprep.subr.mxu0 0.0
    %235 = vmatpush2.msra.mxu0 %v105
    %236 = vmatprep.subr.mxu0 0.0
    %237 = vmatpush2.msra.mxu0 %v104
    %238 = vmatprep.subr.mxu0 0.0
    %239 = vmatpush2.msra.mxu0 %v103
    %240 = vmatprep.mubr.f32.mxu0 %v120
    %241 = vmatmul.mubr.f32.gmra.mxu0 %v49
    %v242 = vpop.f32.mrf.mxu0
    %v243 = vadd.f32 %v116, %v242
    %v244 = vpop.f32.mrf.mxu0
    %245 = vmatprep.mubr.f32.mxu0 %v123
    %246 = vmatmul.mubr.f32.gmra.mxu0 %v51
    %v247 = vpop.f32.mrf.mxu0
    %v248 = vadd.f32 %v116, %v247
    %v249 = vpop.f32.mrf.mxu0
    %250 = vmatprep.mubr.f32.mxu0 %v126
    %251 = vmatmul.mubr.f32.gmra.mxu0 %v53
    %v252 = vpop.f32.mrf.mxu0
    %v253 = vadd.f32 %v116, %v252
    %v254 = vpop.f32.mrf.mxu0
    %255 = vmatprep.mubr.f32.mxu0 %v129
    %256 = vmatmul.mubr.f32.gmra.mxu0 %v55
    %v257 = vpop.f32.mrf.mxu0
    %v258 = vadd.f32 %v116, %v257
    %v259 = vpop.f32.mrf.mxu0
    %260 = vmatprep.mubr.f32.mxu0 %v132
    %261 = vmatmul.mubr.f32.gmra.mxu0 %v57
    %v262 = vpop.f32.mrf.mxu0
    %v263 = vadd.f32 %v116, %v262
    %v264 = vpop.f32.mrf.mxu0
    %265 = vmatprep.mubr.f32.mxu0 %v135
    %266 = vmatmul.mubr.f32.gmra.mxu0 %v59
    %v267 = vpop.f32.mrf.mxu0
    %v268 = vadd.f32 %v116, %v267
    %v269 = vpop.f32.mrf.mxu0
    %270 = vmatprep.mubr.f32.mxu0 %v138
    %271 = vmatmul.mubr.f32.gmra.mxu0 %v61
    %v272 = vpop.f32.mrf.mxu0
    %v273 = vadd.f32 %v116, %v272
    %v274 = vpop.f32.mrf.mxu0
    %275 = vmatprep.mubr.f32.mxu0 %v141
    %276 = vmatmul.mubr.f32.gmra.mxu0 %v63
    %v277 = vpop.f32.mrf.mxu0
    %v278 = vadd.f32 %v116, %v277
    %v279 = vpop.f32.mrf.mxu0
    %280 = vmatprep.mubr.f32.mxu0 %v144
    %281 = vmatmul.mubr.f32.gmra.mxu0 %v65
    %v282 = vpop.f32.mrf.mxu0
    %v283 = vadd.f32 %v116, %v282
    %v284 = vpop.f32.mrf.mxu0
    %285 = vmatprep.mubr.f32.mxu0 %v147
    %286 = vmatmul.mubr.f32.gmra.mxu0 %v67
    %v287 = vpop.f32.mrf.mxu0
    %v288 = vadd.f32 %v116, %v287
    %v289 = vpop.f32.mrf.mxu0
    %290 = vmatprep.mubr.f32.mxu0 %v150
    %291 = vmatmul.mubr.f32.gmra.mxu0 %v69
    %v292 = vpop.f32.mrf.mxu0
    %v293 = vadd.f32 %v116, %v292
    %v294 = vpop.f32.mrf.mxu0
    %295 = vmatprep.mubr.f32.mxu0 %v153
    %296 = vmatmul.mubr.f32.gmra.mxu0 %v71
    %v297 = vpop.f32.mrf.mxu0
    %v298 = vadd.f32 %v116, %v297
    %v299 = vpop.f32.mrf.mxu0
    %300 = vmatprep.mubr.f32.mxu0 %v156
    %301 = vmatmul.mubr.f32.gmra.mxu0 %v73
    %v302 = vpop.f32.mrf.mxu0
    %v303 = vadd.f32 %v116, %v302
    %v304 = vpop.f32.mrf.mxu0
    %305 = vmatprep.mubr.f32.mxu0 %v159
    %306 = vmatmul.mubr.f32.gmra.mxu0 %v75
    %v307 = vpop.f32.mrf.mxu0
    %v308 = vadd.f32 %v116, %v307
    %v309 = vpop.f32.mrf.mxu0
    %310 = vmatprep.mubr.f32.mxu0 %v162
    %311 = vmatmul.mubr.f32.gmra.mxu0 %v77
    %v312 = vpop.f32.mrf.mxu0
    %v313 = vadd.f32 %v116, %v312
    %v314 = vpop.f32.mrf.mxu0
    %315 = vmatprep.mubr.f32.mxu0 %v165
    %316 = vmatmul.mubr.f32.gmra.mxu0 %v79
    %v317 = vpop.f32.mrf.mxu0
    %v318 = vadd.f32 %v116, %v317
    %v319 = vpop.f32.mrf.mxu0
    %320 = vmatprep.mubr.f32.mxu0 %v168
    %321 = vmatmul.mubr.f32.gmra.mxu0 %v81
    %v322 = vpop.f32.mrf.mxu0
    %v323 = vadd.f32 %v116, %v322
    %v324 = vpop.f32.mrf.mxu0
    %325 = vmatprep.mubr.f32.mxu0 %v171
    %326 = vmatmul.mubr.f32.gmra.mxu0 %v83
    %v327 = vpop.f32.mrf.mxu0
    %v328 = vadd.f32 %v116, %v327
    %v329 = vpop.f32.mrf.mxu0
    %330 = vmatprep.mubr.f32.mxu0 %v174
    %331 = vmatmul.mubr.f32.gmra.mxu0 %v85
    %v332 = vpop.f32.mrf.mxu0
    %v333 = vadd.f32 %v116, %v332
    %v334 = vpop.f32.mrf.mxu0
    %335 = vdwg.mxu0
    %vm336 = vcmask 785408
    %v337 = vsel %vm336, %v243, 0.0
    %338 = vadd.xlane.f32.xlu0 %v337
    %v339 = vpop.xlane.xlu0 %338
    %v340 = vsel %vm336, %v248, 0.0
    %341 = vadd.xlane.f32.xlu0 %v340
    %v342 = vpop.xlane.xlu0 %341
    %v343 = vsel %vm336, %v253, 0.0
    %344 = vadd.xlane.f32.xlu0 %v343
    %v345 = vpop.xlane.xlu0 %344
    %v346 = vsel %vm336, %v258, 0.0
    %347 = vadd.xlane.f32.xlu0 %v346
    %v348 = vpop.xlane.xlu0 %347
    %v349 = vsel %vm336, %v263, 0.0
    %350 = vadd.xlane.f32.xlu0 %v349
    %v351 = vpop.xlane.xlu0 %350
    %v352 = vsel %vm336, %v268, 0.0
    %353 = vadd.xlane.f32.xlu0 %v352
    %v354 = vpop.xlane.xlu0 %353
    %v355 = vsel %vm336, %v273, 0.0
    %356 = vadd.xlane.f32.xlu0 %v355
    %v357 = vpop.xlane.xlu0 %356
    %v358 = vsel %vm336, %v278, 0.0
    %359 = vadd.xlane.f32.xlu0 %v358
    %v360 = vpop.xlane.xlu0 %359
    %v361 = vsel %vm336, %v283, 0.0
    %362 = vadd.xlane.f32.xlu0 %v361
    %v363 = vpop.xlane.xlu0 %362
    %v364 = vsel %vm336, %v288, 0.0
    %365 = vadd.xlane.f32.xlu0 %v364
    %v366 = vpop.xlane.xlu0 %365
    %v367 = vsel %vm336, %v293, 0.0
    %368 = vadd.xlane.f32.xlu0 %v367
    %v369 = vpop.xlane.xlu0 %368
    %v370 = vsel %vm336, %v298, 0.0
    %371 = vadd.xlane.f32.xlu0 %v370
    %v372 = vpop.xlane.xlu0 %371
    %v373 = vsel %vm336, %v303, 0.0
    %374 = vadd.xlane.f32.xlu0 %v373
    %v375 = vpop.xlane.xlu0 %374
    %v376 = vsel %vm336, %v308, 0.0
    %377 = vadd.xlane.f32.xlu0 %v376
    %v378 = vpop.xlane.xlu0 %377
    %v379 = vsel %vm336, %v313, 0.0
    %380 = vadd.xlane.f32.xlu0 %v379
    %v381 = vpop.xlane.xlu0 %380
    %v382 = vsel %vm336, %v318, 0.0
    %383 = vadd.xlane.f32.xlu0 %v382
    %v384 = vpop.xlane.xlu0 %383
    %v385 = vsel %vm336, %v323, 0.0
    %386 = vadd.xlane.f32.xlu0 %v385
    %v387 = vpop.xlane.xlu0 %386
    %v388 = vsel %vm336, %v328, 0.0
    %389 = vadd.xlane.f32.xlu0 %v388
    %v390 = vpop.xlane.xlu0 %389
    %v391 = vsel %vm336, %v333, 0.0
    %392 = vadd.xlane.f32.xlu0 %v391
    %v393 = vpop.xlane.xlu0 %392
    %v394 = vrcp.pop 96.0
    %v395 = vmul.f32 %v339, %v394
    %v396 = vmul.f32 %v342, %v394
    %v397 = vmul.f32 %v345, %v394
    %v398 = vmul.f32 %v348, %v394
    %v399 = vmul.f32 %v351, %v394
    %v400 = vmul.f32 %v354, %v394
    %v401 = vmul.f32 %v357, %v394
    %v402 = vmul.f32 %v360, %v394
    %v403 = vmul.f32 %v363, %v394
    %v404 = vmul.f32 %v366, %v394
    %v405 = vmul.f32 %v369, %v394
    %v406 = vmul.f32 %v372, %v394
    %v407 = vmul.f32 %v375, %v394
    %v408 = vmul.f32 %v378, %v394
    %v409 = vmul.f32 %v381, %v394
    %v410 = vmul.f32 %v384, %v394
    %v411 = vmul.f32 %v387, %v394
    %v412 = vmul.f32 %v390, %v394
    %v413 = vmul.f32 %v393, %v394
    %v414 = vsub.f32 %v243, %v395
    %v415 = vsub.f32 %v248, %v396
    %v416 = vsub.f32 %v253, %v397
    %v417 = vsub.f32 %v258, %v398
    %v418 = vsub.f32 %v263, %v399
    %v419 = vsub.f32 %v268, %v400
    %v420 = vsub.f32 %v273, %v401
    %v421 = vsub.f32 %v278, %v402
    %v422 = vsub.f32 %v283, %v403
    %v423 = vsub.f32 %v288, %v404
    %v424 = vsub.f32 %v293, %v405
    %v425 = vsub.f32 %v298, %v406
    %v426 = vsub.f32 %v303, %v407
    %v427 = vsub.f32 %v308, %v408
    %v428 = vsub.f32 %v313, %v409
    %v429 = vsub.f32 %v318, %v410
    %v430 = vsub.f32 %v323, %v411
    %v431 = vsub.f32 %v328, %v412
    %v432 = vsub.f32 %v333, %v413
    %v433 = vmul.f32 %v414, %v414
    %v434 = vmul.f32 %v415, %v415
    %v435 = vmul.f32 %v416, %v416
    %v436 = vmul.f32 %v417, %v417
    %v437 = vmul.f32 %v418, %v418
    %v438 = vmul.f32 %v419, %v419
    %v439 = vmul.f32 %v420, %v420
    %v440 = vmul.f32 %v421, %v421
    %v441 = vmul.f32 %v422, %v422
    %v442 = vmul.f32 %v423, %v423
    %v443 = vmul.f32 %v424, %v424
    %v444 = vmul.f32 %v425, %v425
    %v445 = vmul.f32 %v426, %v426
    %v446 = vmul.f32 %v427, %v427
    %v447 = vmul.f32 %v428, %v428
    %v448 = vmul.f32 %v429, %v429
    %v449 = vmul.f32 %v430, %v430
    %v450 = vmul.f32 %v431, %v431
    %v451 = vmul.f32 %v432, %v432
    %v452 = vsel %vm336, %v433, 0.0
    %453 = vadd.xlane.f32.xlu0 %v452
    %v454 = vpop.xlane.xlu0 %453
    %v455 = vsel %vm336, %v434, 0.0
    %456 = vadd.xlane.f32.xlu0 %v455
    %v457 = vpop.xlane.xlu0 %456
    %v458 = vsel %vm336, %v435, 0.0
    %459 = vadd.xlane.f32.xlu0 %v458
    %v460 = vpop.xlane.xlu0 %459
    %v461 = vsel %vm336, %v436, 0.0
    %462 = vadd.xlane.f32.xlu0 %v461
    %v463 = vpop.xlane.xlu0 %462
    %v464 = vsel %vm336, %v437, 0.0
    %465 = vadd.xlane.f32.xlu0 %v464
    %v466 = vpop.xlane.xlu0 %465
    %v467 = vsel %vm336, %v438, 0.0
    %468 = vadd.xlane.f32.xlu0 %v467
    %v469 = vpop.xlane.xlu0 %468
    %v470 = vsel %vm336, %v439, 0.0
    %471 = vadd.xlane.f32.xlu0 %v470
    %v472 = vpop.xlane.xlu0 %471
    %v473 = vsel %vm336, %v440, 0.0
    %474 = vadd.xlane.f32.xlu0 %v473
    %v475 = vpop.xlane.xlu0 %474
    %v476 = vsel %vm336, %v441, 0.0
    %477 = vadd.xlane.f32.xlu0 %v476
    %v478 = vpop.xlane.xlu0 %477
    %v479 = vsel %vm336, %v442, 0.0
    %480 = vadd.xlane.f32.xlu0 %v479
    %v481 = vpop.xlane.xlu0 %480
    %v482 = vsel %vm336, %v443, 0.0
    %483 = vadd.xlane.f32.xlu0 %v482
    %v484 = vpop.xlane.xlu0 %483
    %v485 = vsel %vm336, %v444, 0.0
    %486 = vadd.xlane.f32.xlu0 %v485
    %v487 = vpop.xlane.xlu0 %486
    %v488 = vsel %vm336, %v445, 0.0
    %489 = vadd.xlane.f32.xlu0 %v488
    %v490 = vpop.xlane.xlu0 %489
    %v491 = vsel %vm336, %v446, 0.0
    %492 = vadd.xlane.f32.xlu0 %v491
    %v493 = vpop.xlane.xlu0 %492
    %v494 = vsel %vm336, %v447, 0.0
    %495 = vadd.xlane.f32.xlu0 %v494
    %v496 = vpop.xlane.xlu0 %495
    %v497 = vsel %vm336, %v448, 0.0
    %498 = vadd.xlane.f32.xlu0 %v497
    %v499 = vpop.xlane.xlu0 %498
    %v500 = vsel %vm336, %v449, 0.0
    %501 = vadd.xlane.f32.xlu0 %v500
    %v502 = vpop.xlane.xlu0 %501
    %v503 = vsel %vm336, %v450, 0.0
    %504 = vadd.xlane.f32.xlu0 %v503
    %v505 = vpop.xlane.xlu0 %504
    %v506 = vsel %vm336, %v451, 0.0
    %507 = vadd.xlane.f32.xlu0 %v506
    %v508 = vpop.xlane.xlu0 %507
    %v509 = vmul.f32 %v454, %v394
    %v510 = vmul.f32 %v457, %v394
    %v511 = vmul.f32 %v460, %v394
    %v512 = vmul.f32 %v463, %v394
    %v513 = vmul.f32 %v466, %v394
    %v514 = vmul.f32 %v469, %v394
    %v515 = vmul.f32 %v472, %v394
    %v516 = vmul.f32 %v475, %v394
    %v517 = vmul.f32 %v478, %v394
    %v518 = vmul.f32 %v481, %v394
    %v519 = vmul.f32 %v484, %v394
    %v520 = vmul.f32 %v487, %v394
    %v521 = vmul.f32 %v490, %v394
    %v522 = vmul.f32 %v493, %v394
    %v523 = vmul.f32 %v496, %v394
    %v524 = vmul.f32 %v499, %v394
    %v525 = vmul.f32 %v502, %v394
    %v526 = vmul.f32 %v505, %v394
    %v527 = vmul.f32 %v508, %v394
    %v528 = vadd.f32 %v509, 1e-05
    %v529 = vadd.f32 %v510, 1e-05
    %v530 = vadd.f32 %v511, 1e-05
    %v531 = vadd.f32 %v512, 1e-05
    %v532 = vadd.f32 %v513, 1e-05
    %v533 = vadd.f32 %v514, 1e-05
    %v534 = vadd.f32 %v515, 1e-05
    %v535 = vadd.f32 %v516, 1e-05
    %v536 = vadd.f32 %v517, 1e-05
    %v537 = vadd.f32 %v518, 1e-05
    %v538 = vadd.f32 %v519, 1e-05
    %v539 = vadd.f32 %v520, 1e-05
    %v540 = vadd.f32 %v521, 1e-05
    %v541 = vadd.f32 %v522, 1e-05
    %v542 = vadd.f32 %v523, 1e-05
    %v543 = vadd.f32 %v524, 1e-05
    %v544 = vadd.f32 %v525, 1e-05
    %v545 = vadd.f32 %v526, 1e-05
    %v546 = vadd.f32 %v527, 1e-05
    %v547 = vrsqrt.pop %v528
    %v548 = vrsqrt.pop %v529
    %v549 = vrsqrt.pop %v530
    %v550 = vrsqrt.pop %v531
    %v551 = vrsqrt.pop %v532
    %v552 = vrsqrt.pop %v533
    %v553 = vrsqrt.pop %v534
    %v554 = vrsqrt.pop %v535
    %v555 = vrsqrt.pop %v536
    %v556 = vrsqrt.pop %v537
    %v557 = vrsqrt.pop %v538
    %v558 = vrsqrt.pop %v539
    %v559 = vrsqrt.pop %v540
    %v560 = vrsqrt.pop %v541
    %v561 = vrsqrt.pop %v542
    %v562 = vrsqrt.pop %v543
    %v563 = vrsqrt.pop %v544
    %v564 = vrsqrt.pop %v545
    %v565 = vrsqrt.pop %v546
    %v566 = vmul.f32 %v414, %v547
    %v567 = vmul.f32 %v415, %v548
    %v568 = vmul.f32 %v416, %v549
    %v569 = vmul.f32 %v417, %v550
    %v570 = vmul.f32 %v418, %v551
    %v571 = vmul.f32 %v419, %v552
    %v572 = vmul.f32 %v420, %v553
    %v573 = vmul.f32 %v421, %v554
    %v574 = vmul.f32 %v422, %v555
    %v575 = vmul.f32 %v423, %v556
    %v576 = vmul.f32 %v424, %v557
    %v577 = vmul.f32 %v425, %v558
    %v578 = vmul.f32 %v426, %v559
    %v579 = vmul.f32 %v427, %v560
    %v580 = vmul.f32 %v428, %v561
    %v581 = vmul.f32 %v429, %v562
    %v582 = vmul.f32 %v430, %v563
    %v583 = vmul.f32 %v431, %v564
    %v584 = vmul.f32 %v432, %v565
    %v585 = vld [vmem:[%s3] sm:$0x1]
    %v587 = vlaneseq
    %v588 = vshrl.u32 %v587, 7
    %v589 = vsub.s32 0, %v588
    %v590 = vrot.slane %v585, %v589
    %v592 = vmul.f32 %v566, %v590
    %v593 = vmul.f32 %v567, %v590
    %v594 = vmul.f32 %v568, %v590
    %v595 = vmul.f32 %v569, %v590
    %v596 = vmul.f32 %v570, %v590
    %v597 = vmul.f32 %v571, %v590
    %v598 = vmul.f32 %v572, %v590
    %v599 = vmul.f32 %v573, %v590
    %v600 = vmul.f32 %v574, %v590
    %v601 = vmul.f32 %v575, %v590
    %v602 = vmul.f32 %v576, %v590
    %v603 = vmul.f32 %v577, %v590
    %v604 = vmul.f32 %v578, %v590
    %v605 = vmul.f32 %v579, %v590
    %v606 = vmul.f32 %v580, %v590
    %v607 = vmul.f32 %v581, %v590
    %v608 = vmul.f32 %v582, %v590
    %v609 = vmul.f32 %v583, %v590
    %v610 = vmul.f32 %v584, %v590
    %v611 = vld [vmem:[%s4] sm:$0x1]
    %v613 = vlaneseq
    %v614 = vshrl.u32 %v613, 7
    %v615 = vsub.s32 0, %v614
    %v616 = vrot.slane %v611, %v615
    %v618 = vadd.f32 %v592, %v616
    %v619 = vadd.f32 %v593, %v616
    %v620 = vadd.f32 %v594, %v616
    %v621 = vadd.f32 %v595, %v616
    %v622 = vadd.f32 %v596, %v616
    %v623 = vadd.f32 %v597, %v616
    %v624 = vadd.f32 %v598, %v616
    %v625 = vadd.f32 %v599, %v616
    %v626 = vadd.f32 %v600, %v616
    %v627 = vadd.f32 %v601, %v616
    %v628 = vadd.f32 %v602, %v616
    %v629 = vadd.f32 %v603, %v616
    %v630 = vadd.f32 %v604, %v616
    %v631 = vadd.f32 %v605, %v616
    %v632 = vadd.f32 %v606, %v616
    %v633 = vadd.f32 %v607, %v616
    %v634 = vadd.f32 %v608, %v616
    %v635 = vadd.f32 %v609, %v616
    %v636 = vadd.f32 %v610, %v616
    %637 = vst.msk [vmem:[#allocation7] sm:$0xff] %vm336, %v618
    %638 = vst.msk [vmem:[#allocation7 + $0x8] sm:$0xff] %vm336, %v619
    %639 = vst.msk [vmem:[#allocation7 + $0x10] sm:$0xff] %vm336, %v620
    %640 = vst.msk [vmem:[#allocation7 + $0x18] sm:$0xff] %vm336, %v621
    %641 = vst.msk [vmem:[#allocation7 + $0x20] sm:$0xff] %vm336, %v622
    %642 = vst.msk [vmem:[#allocation7 + $0x28] sm:$0xff] %vm336, %v623
    %643 = vst.msk [vmem:[#allocation7 + $0x30] sm:$0xff] %vm336, %v624
    %644 = vst.msk [vmem:[#allocation7 + $0x38] sm:$0xff] %vm336, %v625
    %645 = vst.msk [vmem:[#allocation7 + $0x40] sm:$0xff] %vm336, %v626
    %646 = vst.msk [vmem:[#allocation7 + $0x48] sm:$0xff] %vm336, %v627
    %647 = vst.msk [vmem:[#allocation7 + $0x50] sm:$0xff] %vm336, %v628
    %648 = vst.msk [vmem:[#allocation7 + $0x58] sm:$0xff] %vm336, %v629
    %649 = vst.msk [vmem:[#allocation7 + $0x60] sm:$0xff] %vm336, %v630
    %650 = vst.msk [vmem:[#allocation7 + $0x68] sm:$0xff] %vm336, %v631
    %651 = vst.msk [vmem:[#allocation7 + $0x70] sm:$0xff] %vm336, %v632
    %652 = vst.msk [vmem:[#allocation7 + $0x78] sm:$0xff] %vm336, %v633
    %653 = vst.msk [vmem:[#allocation7 + $0x80] sm:$0xff] %vm336, %v634
    %654 = vst.msk [vmem:[#allocation7 + $0x88] sm:$0xff] %vm336, %v635
    %655 = vst.msk [vmem:[#allocation7 + $0x90] sm:$0xff] %vm336, %v636
    // Predicated region
    $region30: #{tpu_custom_call.1} parent=1 // pred_check
      _
    $region31: #{tpu_custom_call.1} parent=1 // pred_check_branch
      %657 = sbr.rel (0) target = $region33
    $region32: #{tpu_custom_call.1} parent=1 // pred_region
      %s659 = ssub.s32 2432, 2432
      %660 = vsyncadd [#allocation4], %s659
      %s661 = sshll.u32 [#allocation7], 4
      %s662 = int_to_ptr.vmem [resolvable:$true] %s661
      %667 = dma.vmem_to_hbm [thread:$0]  %s662, 2432, %s5, [#allocation4], 128, 128, 8
    $region33: #{tpu_custom_call.1} parent=1 // pred_fallthru
      _
    // Predicated region
    $region34: #{tpu_custom_call.1} parent=1 // pred_check
      _
    $region35: #{tpu_custom_call.1} parent=1 // pred_check_branch
      %669 = sbr.rel (0) target = $region37
    $region36: #{tpu_custom_call.1} parent=1 // pred_region
      %670 = dma.done [#allocation4], 2432
    $region37: #{tpu_custom_call.1} parent=1 // pred_fallthru
      _
    %671 = vsyncpa [#allocation3], 1
    %672 = vsyncpa [#allocation6], 1
    %673 = vsyncpa [#allocation4], 1

</llo_original>
